<compile_context>
chip_gen: v7x
topology: tpu7x:2x2x1
jax: 0.10.0
libtpu: 0.0.40
codegen_flags: <defaults>
</compile_context>

<pallas_src>
import jax
import jax.numpy as jnp
from jax.experimental import pallas as pl
from jax.experimental.pallas import tpu as pltpu


def _detector_loss_kernel(ct_ref, cp_ref, m_ref, gt_ref, gp_ref, out_ref):
    f32 = jnp.float32

    ct = ct_ref[0].astype(f32)          # (th, W) true class map tile
    cp = cp_ref[0].astype(f32)          # (th, W) predicted class map tile
    m = m_ref[0].astype(f32)            # (th, W) training mask tile
    ctm = ct * m                        # shared by dice-true / dice-inter / geo mask

    # Geometry planes read directly from the refs (no (4, th, W) temporaries).
    d1_gt = gt_ref[0, 0].astype(f32)
    d2_gt = gt_ref[0, 1].astype(f32)
    d3_gt = gt_ref[0, 2].astype(f32)
    d4_gt = gt_ref[0, 3].astype(f32)
    d1_pr = gp_ref[0, 0].astype(f32)
    d2_pr = gp_ref[0, 1].astype(f32)
    d3_pr = gp_ref[0, 2].astype(f32)
    d4_pr = gp_ref[0, 3].astype(f32)

    # --- AABB IoU loss (per-pixel) ----------------------------------------
    area_gt = (d1_gt + d3_gt) * (d2_gt + d4_gt)
    area_pred = (d1_pr + d3_pr) * (d2_pr + d4_pr)
    w_union = jnp.minimum(d2_gt, d2_pr) + jnp.minimum(d4_gt, d4_pr)
    h_union = jnp.minimum(d1_gt, d1_pr) + jnp.minimum(d3_gt, d3_pr)
    area_intersect = w_union * h_union
    area_union = area_gt + area_pred - area_intersect
    # -log((ai+1)/(au+1)) == log(au+1) - log(ai+1): no per-pixel divide (EUP has slack)
    l_aabb = jnp.log(area_union + 1.0) - jnp.log(area_intersect + 1.0)

    # --- vreg-granular sublane fold: (th, W) -> (8, W) per statistic --------
    def fold8(x):
        th, w = x.shape
        if th % 8 == 0:
            return x.reshape(th // 8, 8, w).sum(axis=0)
        # Rare fallback (th == H and H not a multiple of 8): full sublane
        # reduce then pad back to 8 rows so the store stays full-vreg shaped.
        s = jnp.sum(x, axis=0, keepdims=True)
        return jnp.pad(s, ((0, 7), (0, 0)))

    # One consolidated (32, W) partial-sum block per grid step; each 8-sublane
    # slab starts at a multiple of 8 => unmasked full-vreg stores.
    out_ref[0, 0, 0:8, :] = fold8(ctm * cp)        # dice intersection
    out_ref[0, 0, 8:16, :] = fold8(ctm)            # sum(true * mask)
    out_ref[0, 0, 16:24, :] = fold8(cp * m)        # sum(pred * mask)
    out_ref[0, 0, 24:32, :] = fold8(l_aabb * ctm)  # sum(L_AABB * true * mask)


def _vmem_limit_bytes():
    """75% of physical per-core VMEM (leave headroom for compiler scratch);
    conservative 64 MiB (v7x) assumption when the query is unavailable."""
    phys = 64 << 20
    try:
        info = pltpu.get_tpu_info()
        cap = getattr(info, "vmem_capacity_bytes", None)
        if cap:
            phys = int(cap)
    except Exception:
        pass
    return max(16 << 20, (phys * 3) // 4)


def _pick_row_tile(H, W, bytes_per_pixel, budget, sub_mult):
    """Largest sublane-aligned row tile dividing H whose working set
    (double-buffered inputs + ~14 in-kernel f32 temporary planes) fits budget."""
    per_row = 2 * W * bytes_per_pixel + 14 * W * 4
    max_rows = max(sub_mult, budget // max(1, per_row))
    th = min(H, 1024, int(max_rows))
    th -= th % sub_mult
    while th >= sub_mult and H % th:
        th -= sub_mult
    if th < sub_mult or H % th:
        th = H   # whole-height block is always a legal block shape
    return th


def detector_loss(y_true_cls, y_pred_cls, y_true_geo, y_pred_geo,
                  training_masks):
    B, _, H, W = y_true_cls.shape
    f32 = jnp.float32

    # Contiguous reshapes only (C=1); geometry stays in native (B, 4, H, W).
    ct = y_true_cls.reshape(B, H, W)
    cp = y_pred_cls.reshape(B, H, W)
    msk = training_masks.reshape(B, H, W)
    gt = y_true_geo
    gp = y_pred_geo

    bytes_per_pixel = (ct.dtype.itemsize + cp.dtype.itemsize
                       + msk.dtype.itemsize
                       + 4 * gt.dtype.itemsize + 4 * gp.dtype.itemsize)
    min_itemsize = min(ct.dtype.itemsize, cp.dtype.itemsize, msk.dtype.itemsize,
                       gt.dtype.itemsize, gp.dtype.itemsize)
    # Sublane alignment for packed dtypes: 8 rows (f32), 16 (bf16), 32 (int8).
    sub_mult = 8 * max(1, 4 // max(1, min_itemsize))

    vmem_limit = _vmem_limit_bytes()
    th = _pick_row_tile(H, W, bytes_per_pixel, vmem_limit // 2, sub_mult)
    nh = H // th

    cls_spec = pl.BlockSpec((1, th, W), lambda b, h: (b, h, 0))
    geo_spec = pl.BlockSpec((1, 4, th, W), lambda b, h: (b, 0, h, 0))
    out_spec = pl.BlockSpec((1, 1, 32, W), lambda b, h: (b, h, 0, 0))
    out_shape = jax.ShapeDtypeStruct((B, nh, 32, W), f32)

    n_px = B * H * W
    cost = pl.CostEstimate(
        flops=22 * n_px,
        transcendentals=2 * n_px,
        bytes_accessed=(ct.nbytes + cp.nbytes + msk.nbytes
                        + gt.nbytes + gp.nbytes + B * nh * 32 * W * 4),
    )

    partials = pl.pallas_call(
        _detector_loss_kernel,
        out_shape=out_shape,
        grid_spec=pltpu.PrefetchScalarGridSpec(
            num_scalar_prefetch=0,
            grid=(B, nh),
            in_specs=[cls_spec, cls_spec, cls_spec, geo_spec, geo_spec],
            out_specs=out_spec,
        ),
        compiler_params=pltpu.CompilerParams(
            dimension_semantics=("parallel", "parallel"),
            vmem_limit_bytes=int(vmem_limit)),
        cost_estimate=cost,
    )(ct, cp, msk, gt, gp)

    # Final sublane / lane / tile / batch fold + scalar finalization in JAX.
    stats = partials.reshape(B, nh, 4, 8 * W).sum(axis=(0, 1, 3))  # (4,)
    intersection, sum_true, sum_pred, sum_geo = (stats[0], stats[1],
                                                 stats[2], stats[3])

    eps = 1e-5
    dice_loss = 1.0 - 2.0 * intersection / (sum_true + sum_pred + eps)
    classification_loss = dice_loss * 0.01
    geo_loss = sum_geo / (B * 1 * H * W)   # torch.mean over B*1*H*W elements
    return classification_loss, geo_loss


def _reference_loss(y_true_cls, y_pred_cls, y_true_geo, y_pred_geo,
                    training_masks):
    eps = 1e-5
    intersection = jnp.sum(y_true_cls * y_pred_cls * training_masks)
    union = (jnp.sum(y_true_cls * training_masks)
             + jnp.sum(y_pred_cls * training_masks) + eps)
    cls_loss = (1.0 - 2.0 * intersection / union) * 0.01

    d1_gt, d2_gt, d3_gt, d4_gt = jnp.split(y_true_geo, 4, axis=1)
    d1_pr, d2_pr, d3_pr, d4_pr = jnp.split(y_pred_geo, 4, axis=1)
    area_gt = (d1_gt + d3_gt) * (d2_gt + d4_gt)
    area_pred = (d1_pr + d3_pr) * (d2_pr + d4_pr)
    w_union = jnp.minimum(d2_gt, d2_pr) + jnp.minimum(d4_gt, d4_pr)
    h_union = jnp.minimum(d1_gt, d1_pr) + jnp.minimum(d3_gt, d3_pr)
    area_intersect = w_union * h_union
    area_union = area_gt + area_pred - area_intersect
    l_aabb = -jnp.log((area_intersect + 1.0) / (area_union + 1.0))
    geo_loss = jnp.mean(l_aabb * y_true_cls * training_masks)
    return cls_loss, geo_loss


if __name__ == "__main__":
    # Shapes from the module docstring: B x {1,4} x 128 x 128.
    B, H, W = 2, 128, 128
    key = jax.random.PRNGKey(0)
    k1, k2, k3, k4, k5 = jax.random.split(key, 5)

    y_true_cls = (jax.random.uniform(k1, (B, 1, H, W)) > 0.5).astype(jnp.float32)
    y_pred_cls = jax.random.uniform(k2, (B, 1, H, W), dtype=jnp.float32)
    training_masks = (jax.random.uniform(k3, (B, 1, H, W)) > 0.2).astype(jnp.float32)
    y_true_geo = jax.random.uniform(k4, (B, 4, H, W), dtype=jnp.float32) * 10.0
    y_pred_geo = jax.random.uniform(k5, (B, 4, H, W), dtype=jnp.float32) * 10.0

    loss_fn = jax.jit(detector_loss)
    cls_loss, geo_loss = loss_fn(
        y_true_cls, y_pred_cls, y_true_geo, y_pred_geo, training_masks)
    cls_loss = jax.block_until_ready(cls_loss)
    geo_loss = jax.block_until_ready(geo_loss)

    ref_cls, ref_geo = _reference_loss(
        y_true_cls, y_pred_cls, y_true_geo, y_pred_geo, training_masks)
    assert jnp.allclose(cls_loss, ref_cls, rtol=1e-4, atol=1e-5), (cls_loss, ref_cls)
    assert jnp.allclose(geo_loss, ref_geo, rtol=1e-4, atol=1e-5), (geo_loss, ref_geo)

    print("KERNEL_OK")
</pallas_src>

<mosaic_0001>
module attributes {stable_mosaic.version = 11 : i64} {
  func.func @_detector_loss_kernel(%arg0: i32, %arg1: i32, %arg2: memref<1x128x128xf32, #tpu.memory_space<vmem>>, %arg3: memref<1x128x128xf32, #tpu.memory_space<vmem>>, %arg4: memref<1x128x128xf32, #tpu.memory_space<vmem>>, %arg5: memref<1x4x128x128xf32, #tpu.memory_space<vmem>>, %arg6: memref<1x4x128x128xf32, #tpu.memory_space<vmem>>, %arg7: memref<1x1x32x128xf32, #tpu.memory_space<vmem>>) attributes {dimension_semantics = [#tpu.dimension_semantics<parallel>, #tpu.dimension_semantics<parallel>], iteration_bounds = array<i64: 2, 1>, scalar_prefetch = 0 : i64, scratch_operands = 0 : i64, tpu.core_type = #tpu.core_type<tc>, window_params = [{transform_indices = @transform_0, window_bounds = array<i64: 1, 128, 128>}, {transform_indices = @transform_1, window_bounds = array<i64: 1, 128, 128>}, {transform_indices = @transform_2, window_bounds = array<i64: 1, 128, 128>}, {transform_indices = @transform_3, window_bounds = array<i64: 1, 4, 128, 128>}, {transform_indices = @transform_4, window_bounds = array<i64: 1, 4, 128, 128>}, {transform_indices = @transform_5, window_bounds = array<i64: 1, 1, 32, 128>}]} {
    %c0 = arith.constant 0 : index
    %c0_0 = arith.constant 0 : index
    %c0_1 = arith.constant 0 : index
    %0 = vector.load %arg2[%c0, %c0_0, %c0_1] : memref<1x128x128xf32, #tpu.memory_space<vmem>>, vector<1x128x128xf32>
    %1 = vector.shape_cast %0 : vector<1x128x128xf32> to vector<128x128xf32>
    %c0_2 = arith.constant 0 : index
    %c0_3 = arith.constant 0 : index
    %c0_4 = arith.constant 0 : index
    %2 = vector.load %arg3[%c0_2, %c0_3, %c0_4] : memref<1x128x128xf32, #tpu.memory_space<vmem>>, vector<1x128x128xf32>
    %3 = vector.shape_cast %2 : vector<1x128x128xf32> to vector<128x128xf32>
    %c0_5 = arith.constant 0 : index
    %c0_6 = arith.constant 0 : index
    %c0_7 = arith.constant 0 : index
    %4 = vector.load %arg4[%c0_5, %c0_6, %c0_7] : memref<1x128x128xf32, #tpu.memory_space<vmem>>, vector<1x128x128xf32>
    %5 = vector.shape_cast %4 : vector<1x128x128xf32> to vector<128x128xf32>
    %6 = arith.mulf %1, %5 : vector<128x128xf32>
    %c0_8 = arith.constant 0 : index
    %c0_9 = arith.constant 0 : index
    %c0_10 = arith.constant 0 : index
    %c0_11 = arith.constant 0 : index
    %7 = vector.load %arg5[%c0_8, %c0_9, %c0_10, %c0_11] : memref<1x4x128x128xf32, #tpu.memory_space<vmem>>, vector<1x1x128x128xf32>
    %8 = vector.shape_cast %7 : vector<1x1x128x128xf32> to vector<128x128xf32>
    %c0_12 = arith.constant 0 : index
    %c1 = arith.constant 1 : index
    %c0_13 = arith.constant 0 : index
    %c0_14 = arith.constant 0 : index
    %9 = vector.load %arg5[%c0_12, %c1, %c0_13, %c0_14] : memref<1x4x128x128xf32, #tpu.memory_space<vmem>>, vector<1x1x128x128xf32>
    %10 = vector.shape_cast %9 : vector<1x1x128x128xf32> to vector<128x128xf32>
    %c0_15 = arith.constant 0 : index
    %c2 = arith.constant 2 : index
    %c0_16 = arith.constant 0 : index
    %c0_17 = arith.constant 0 : index
    %11 = vector.load %arg5[%c0_15, %c2, %c0_16, %c0_17] : memref<1x4x128x128xf32, #tpu.memory_space<vmem>>, vector<1x1x128x128xf32>
    %12 = vector.shape_cast %11 : vector<1x1x128x128xf32> to vector<128x128xf32>
    %c0_18 = arith.constant 0 : index
    %c3 = arith.constant 3 : index
    %c0_19 = arith.constant 0 : index
    %c0_20 = arith.constant 0 : index
    %13 = vector.load %arg5[%c0_18, %c3, %c0_19, %c0_20] : memref<1x4x128x128xf32, #tpu.memory_space<vmem>>, vector<1x1x128x128xf32>
    %14 = vector.shape_cast %13 : vector<1x1x128x128xf32> to vector<128x128xf32>
    %c0_21 = arith.constant 0 : index
    %c0_22 = arith.constant 0 : index
    %c0_23 = arith.constant 0 : index
    %c0_24 = arith.constant 0 : index
    %15 = vector.load %arg6[%c0_21, %c0_22, %c0_23, %c0_24] : memref<1x4x128x128xf32, #tpu.memory_space<vmem>>, vector<1x1x128x128xf32>
    %16 = vector.shape_cast %15 : vector<1x1x128x128xf32> to vector<128x128xf32>
    %c0_25 = arith.constant 0 : index
    %c1_26 = arith.constant 1 : index
    %c0_27 = arith.constant 0 : index
    %c0_28 = arith.constant 0 : index
    %17 = vector.load %arg6[%c0_25, %c1_26, %c0_27, %c0_28] : memref<1x4x128x128xf32, #tpu.memory_space<vmem>>, vector<1x1x128x128xf32>
    %18 = vector.shape_cast %17 : vector<1x1x128x128xf32> to vector<128x128xf32>
    %c0_29 = arith.constant 0 : index
    %c2_30 = arith.constant 2 : index
    %c0_31 = arith.constant 0 : index
    %c0_32 = arith.constant 0 : index
    %19 = vector.load %arg6[%c0_29, %c2_30, %c0_31, %c0_32] : memref<1x4x128x128xf32, #tpu.memory_space<vmem>>, vector<1x1x128x128xf32>
    %20 = vector.shape_cast %19 : vector<1x1x128x128xf32> to vector<128x128xf32>
    %c0_33 = arith.constant 0 : index
    %c3_34 = arith.constant 3 : index
    %c0_35 = arith.constant 0 : index
    %c0_36 = arith.constant 0 : index
    %21 = vector.load %arg6[%c0_33, %c3_34, %c0_35, %c0_36] : memref<1x4x128x128xf32, #tpu.memory_space<vmem>>, vector<1x1x128x128xf32>
    %22 = vector.shape_cast %21 : vector<1x1x128x128xf32> to vector<128x128xf32>
    %23 = arith.addf %8, %12 : vector<128x128xf32>
    %24 = arith.addf %10, %14 : vector<128x128xf32>
    %25 = arith.mulf %23, %24 : vector<128x128xf32>
    %26 = arith.addf %16, %20 : vector<128x128xf32>
    %27 = arith.addf %18, %22 : vector<128x128xf32>
    %28 = arith.mulf %26, %27 : vector<128x128xf32>
    %29 = arith.minimumf %10, %18 : vector<128x128xf32>
    %30 = arith.minimumf %14, %22 : vector<128x128xf32>
    %31 = arith.addf %29, %30 : vector<128x128xf32>
    %32 = arith.minimumf %8, %16 : vector<128x128xf32>
    %33 = arith.minimumf %12, %20 : vector<128x128xf32>
    %34 = arith.addf %32, %33 : vector<128x128xf32>
    %35 = arith.mulf %31, %34 : vector<128x128xf32>
    %36 = arith.addf %25, %28 : vector<128x128xf32>
    %37 = arith.subf %36, %35 : vector<128x128xf32>
    %cst = arith.constant 1.000000e+00 : f32
    %38 = vector.broadcast %cst : f32 to vector<128x128xf32>
    %39 = arith.addf %37, %38 : vector<128x128xf32>
    %40 = math.log %39 : vector<128x128xf32>
    %cst_37 = arith.constant 1.000000e+00 : f32
    %41 = vector.broadcast %cst_37 : f32 to vector<128x128xf32>
    %42 = arith.addf %35, %41 : vector<128x128xf32>
    %43 = math.log %42 : vector<128x128xf32>
    %44 = arith.subf %40, %43 : vector<128x128xf32>
    %45 = arith.mulf %6, %3 : vector<128x128xf32>
    %46 = vector.shape_cast %45 : vector<128x128xf32> to vector<16x8x128xf32>
    %cst_38 = arith.constant dense<0.000000e+00> : vector<8x128xf32>
    %47 = vector.multi_reduction <add>, %46, %cst_38 [0] : vector<16x8x128xf32> to vector<8x128xf32>
    %c0_39 = arith.constant 0 : index
    %c0_40 = arith.constant 0 : index
    %c0_41 = arith.constant 0 : index
    %c0_42 = arith.constant 0 : index
    %48 = vector.load %arg7[%c0_39, %c0_40, %c0_41, %c0_42] : memref<1x1x32x128xf32, #tpu.memory_space<vmem>>, vector<1x1x8x128xf32>
    %49 = vector.shape_cast %48 : vector<1x1x8x128xf32> to vector<8x128xf32>
    %50 = vector.shape_cast %47 : vector<8x128xf32> to vector<1x1x8x128xf32>
    tpu.vector_store %arg7[%c0_39, %c0_40, %c0_41, %c0_42], %50 {strides = array<i32>} : memref<1x1x32x128xf32, #tpu.memory_space<vmem>>, vector<1x1x8x128xf32>,
    %51 = vector.shape_cast %6 : vector<128x128xf32> to vector<16x8x128xf32>
    %cst_43 = arith.constant dense<0.000000e+00> : vector<8x128xf32>
    %52 = vector.multi_reduction <add>, %51, %cst_43 [0] : vector<16x8x128xf32> to vector<8x128xf32>
    %c0_44 = arith.constant 0 : index
    %c0_45 = arith.constant 0 : index
    %c8 = arith.constant 8 : index
    %c0_46 = arith.constant 0 : index
    %53 = vector.load %arg7[%c0_44, %c0_45, %c8, %c0_46] : memref<1x1x32x128xf32, #tpu.memory_space<vmem>>, vector<1x1x8x128xf32>
    %54 = vector.shape_cast %53 : vector<1x1x8x128xf32> to vector<8x128xf32>
    %55 = vector.shape_cast %52 : vector<8x128xf32> to vector<1x1x8x128xf32>
    tpu.vector_store %arg7[%c0_44, %c0_45, %c8, %c0_46], %55 {strides = array<i32>} : memref<1x1x32x128xf32, #tpu.memory_space<vmem>>, vector<1x1x8x128xf32>,
    %56 = arith.mulf %3, %5 : vector<128x128xf32>
    %57 = vector.shape_cast %56 : vector<128x128xf32> to vector<16x8x128xf32>
    %cst_47 = arith.constant dense<0.000000e+00> : vector<8x128xf32>
    %58 = vector.multi_reduction <add>, %57, %cst_47 [0] : vector<16x8x128xf32> to vector<8x128xf32>
    %c0_48 = arith.constant 0 : index
    %c0_49 = arith.constant 0 : index
    %c16 = arith.constant 16 : index
    %c0_50 = arith.constant 0 : index
    %59 = vector.load %arg7[%c0_48, %c0_49, %c16, %c0_50] : memref<1x1x32x128xf32, #tpu.memory_space<vmem>>, vector<1x1x8x128xf32>
    %60 = vector.shape_cast %59 : vector<1x1x8x128xf32> to vector<8x128xf32>
    %61 = vector.shape_cast %58 : vector<8x128xf32> to vector<1x1x8x128xf32>
    tpu.vector_store %arg7[%c0_48, %c0_49, %c16, %c0_50], %61 {strides = array<i32>} : memref<1x1x32x128xf32, #tpu.memory_space<vmem>>, vector<1x1x8x128xf32>,
    %62 = arith.mulf %44, %6 : vector<128x128xf32>
    %63 = vector.shape_cast %62 : vector<128x128xf32> to vector<16x8x128xf32>
    %cst_51 = arith.constant dense<0.000000e+00> : vector<8x128xf32>
    %64 = vector.multi_reduction <add>, %63, %cst_51 [0] : vector<16x8x128xf32> to vector<8x128xf32>
    %c0_52 = arith.constant 0 : index
    %c0_53 = arith.constant 0 : index
    %c24 = arith.constant 24 : index
    %c0_54 = arith.constant 0 : index
    %65 = vector.load %arg7[%c0_52, %c0_53, %c24, %c0_54] : memref<1x1x32x128xf32, #tpu.memory_space<vmem>>, vector<1x1x8x128xf32>
    %66 = vector.shape_cast %65 : vector<1x1x8x128xf32> to vector<8x128xf32>
    %67 = vector.shape_cast %64 : vector<8x128xf32> to vector<1x1x8x128xf32>
    tpu.vector_store %arg7[%c0_52, %c0_53, %c24, %c0_54], %67 {strides = array<i32>} : memref<1x1x32x128xf32, #tpu.memory_space<vmem>>, vector<1x1x8x128xf32>,
    return
  }
  func.func @transform_0(%arg0: i32, %arg1: i32) -> (i32, i32, i32) {
    %c0_i32 = arith.constant 0 : i32
    %c0_i32_0 = arith.constant 0 : i32
    return %arg0, %arg1, %c0_i32 : i32, i32, i32
  }
  func.func @transform_1(%arg0: i32, %arg1: i32) -> (i32, i32, i32) {
    %c0_i32 = arith.constant 0 : i32
    %c0_i32_0 = arith.constant 0 : i32
    return %arg0, %arg1, %c0_i32 : i32, i32, i32
  }
  func.func @transform_2(%arg0: i32, %arg1: i32) -> (i32, i32, i32) {
    %c0_i32 = arith.constant 0 : i32
    %c0_i32_0 = arith.constant 0 : i32
    return %arg0, %arg1, %c0_i32 : i32, i32, i32
  }
  func.func @transform_3(%arg0: i32, %arg1: i32) -> (i32, i32, i32, i32) {
    %c0_i32 = arith.constant 0 : i32
    %c0_i32_0 = arith.constant 0 : i32
    %c0_i32_1 = arith.constant 0 : i32
    return %arg0, %c0_i32, %arg1, %c0_i32_0 : i32, i32, i32, i32
  }
  func.func @transform_4(%arg0: i32, %arg1: i32) -> (i32, i32, i32, i32) {
    %c0_i32 = arith.constant 0 : i32
    %c0_i32_0 = arith.constant 0 : i32
    %c0_i32_1 = arith.constant 0 : i32
    return %arg0, %c0_i32, %arg1, %c0_i32_0 : i32, i32, i32, i32
  }
  func.func @transform_5(%arg0: i32, %arg1: i32) -> (i32, i32, i32, i32) {
    %c0_i32 = arith.constant 0 : i32
    %c0_i32_0 = arith.constant 0 : i32
    %c0_i32_1 = arith.constant 0 : i32
    return %arg0, %arg1, %c0_i32, %c0_i32_0 : i32, i32, i32, i32
  }
}

</mosaic_0001>

<llo_original>
// kernel: detector_loss.1
$region0: #{detector_loss.1}
  #allocation0 [shape = 'u32[]', space=smem, size = 0x4, offset = 0x4, fixed_abs, tag = 'smem constant byte address 0x4 - core index']
  #allocation1 [shape = 'u32[144,128]{1,0:T(1,128)}', space=vmem, size = 0x12000, scoped, tag = 'internal scratch']
  %s0 = inlined_call_operand.hbm [shape: f32[2,128,128], index: 0, kind: input, shape index: {}]
  %s1 = inlined_call_operand.hbm [shape: f32[2,128,128], index: 1, kind: input, shape index: {}]
  %s2 = inlined_call_operand.hbm [shape: f32[2,128,128], index: 2, kind: input, shape index: {}]
  %s3 = inlined_call_operand.hbm [shape: f32[2,4,128,128], index: 3, kind: input, shape index: {}]
  %s4 = inlined_call_operand.hbm [shape: f32[2,4,128,128], index: 4, kind: input, shape index: {}]
  %s5 = inlined_call_operand.vmem [shape: f32[2,1,32,128], index: 5, kind: output, shape index: {}]
  %s6 = sld [smem:[#allocation0]]
  $region73: #{detector_loss.1} parent=0
    _
  %s8 = ssub.s32 1, %s6
  %s9 = scalar_select 0, %s8, %s6
  $region1: #{detector_loss.1} parent=0
    #allocation2 [shape = 'u8[131072]{0}', space=vmem, size = 0x20000, scoped, tag = 'input window, operand 0']
    #allocation3 [shape = 's32[2]{0}', space=sflag, size = 0x8, scoped, tag = 'scoped memory for detector_loss.1']
    #allocation4 [shape = 'u8[131072]{0}', space=vmem, size = 0x20000, scoped, tag = 'input window, operand 1']
    #allocation5 [shape = 's32[2]{0}', space=sflag, size = 0x8, scoped, tag = 'scoped memory for detector_loss.1']
    #allocation6 [shape = 'u8[131072]{0}', space=vmem, size = 0x20000, scoped, tag = 'input window, operand 2']
    #allocation7 [shape = 'u8[524288]{0}', space=vmem, size = 0x80000, scoped, tag = 'input window, operand 3']
    #allocation8 [shape = 's32[2]{0}', space=sflag, size = 0x8, scoped, tag = 'scoped memory for detector_loss.1']
    #allocation9 [shape = 'u8[524288]{0}', space=vmem, size = 0x80000, scoped, tag = 'input window, operand 4']
    %10 = vsyncpa [#allocation3], 0
    %s11 = scalar_lea.sflag [#allocation3], 1
    %12 = vsyncpa %s11, 0
    %13 = vsyncpa [#allocation5], 0
    %s14 = scalar_lea.sflag [#allocation5], 1
    %15 = vsyncpa %s14, 0
    %16 = vsyncpa [#allocation8], 0
    %s17 = scalar_lea.sflag [#allocation8], 1
    %18 = vsyncpa %s17, 0
    loop: start=0, step=1, limit=4
    $region2: #{detector_loss.1} parent=1 // loop_pre_header
      _
    $region3: #{detector_loss.1} parent=1 // loop_header
      %s20 = sphi 0, %s24
      %p21 = scmp.ge.s32.totalorder %s20, 4
      %s27 = sphi 0, %s39
      %s28 = sphi 0, %s35
      %s29 = sphi 0, %s27
      %s30 = sphi 0, %s28
      %s31 = sphi 0, %s29
      %s32 = sphi 0, %s30
      %s44 = sphi 0, %s46
      %s47 = sphi 0, %s44
      %s48 = sphi 0, %s47
      %s64 = sphi 0, %s48
      %s72 = sphi 0, %s74
      %s75 = sphi 0, %s72
      %s76 = sphi 0, %s75
      %s92 = sphi 0, %s76
      %s100 = sphi 0, %s102
      %s103 = sphi 0, %s100
      %s104 = sphi 0, %s103
      %s120 = sphi 0, %s104
      %s128 = sphi 0, %s130
      %s131 = sphi 0, %s128
      %s132 = sphi 0, %s131
      %s148 = sphi 0, %s132
      %s156 = sphi 0, %s158
      %s159 = sphi 0, %s156
      %s160 = sphi 0, %s159
      %s176 = sphi 0, %s160
      %s184 = sphi 0, %s186
      %s187 = sphi 0, %s184
      %s188 = sphi 0, %s187
      %s204 = sphi 0, %s188
    $region4: #{detector_loss.1} parent=1 // loop_header_branch
      %23 = sbr.rel (%p21) target = $region8
    $region5: #{detector_loss.1} parent=1 // loop_body
      %s25 = ssub.s32 %s20, 1
      %s26 = ssub.s32 %s20, 2
      %s33 = sadd.s32 1, %s28
      %p34 = scmp.ge.s32.totalorder %s33, 1
      %s35 = scalar_select %p34, 0, %s33
      %s36 = sadd.s32 1, %s27
      %s37 = scalar_select %p34, %s36, %s27
      %p38 = scmp.ge.s32.totalorder %s37, 2
      %s39 = scalar_select %p38, 0, %s37
      %s40 = ssub.s32 %s27, %s39
      %s41 = ssub.s32 %s28, %s35
      %s42 = sor.u32 %s40, %s41
      %p43 = scmp.eq.s32.totalorder %s42, 0
      %s45 = sadd.s32 %s44, 1
      %s46 = scalar_select %p43, %s44, %s45
      %p49 = pneg %p43
      %p50 = scmp.eq.s32.totalorder %s20, 1
      %p51 = por %p49, %p50
      %p52 = scmp.ne.s32.totalorder %s44, %s47
      %p53 = scmp.eq.s32.totalorder %s20, 0
      %p54 = por %p52, %p53
      %p55 = scmp.ne.s32.totalorder %s44, %s47
      %p56 = scmp.eq.s32.totalorder %s25, 1
      %p57 = por %p55, %p56
      %p58 = scmp.ne.s32.totalorder %s47, %s48
      %p59 = scmp.eq.s32.totalorder %s25, 0
      %p60 = por %p58, %p59
      %p61 = scmp.ne.s32.totalorder %s47, %s48
      %p62 = scmp.eq.s32.totalorder %s26, 1
      %p63 = por %p61, %p62
      %p65 = scmp.ne.s32.totalorder %s48, %s64
      %p66 = scmp.eq.s32.totalorder %s26, 0
      %p67 = por %p65, %p66
      %s68 = ssub.s32 %s27, %s39
      %s69 = ssub.s32 %s28, %s35
      %s70 = sor.u32 %s68, %s69
      %p71 = scmp.eq.s32.totalorder %s70, 0
      %s73 = sadd.s32 %s72, 1
      %s74 = scalar_select %p71, %s72, %s73
      %p77 = pneg %p71
      %p78 = scmp.eq.s32.totalorder %s20, 1
      %p79 = por %p77, %p78
      %p80 = scmp.ne.s32.totalorder %s72, %s75
      %p81 = scmp.eq.s32.totalorder %s20, 0
      %p82 = por %p80, %p81
      %p83 = scmp.ne.s32.totalorder %s72, %s75
      %p84 = scmp.eq.s32.totalorder %s25, 1
      %p85 = por %p83, %p84
      %p86 = scmp.ne.s32.totalorder %s75, %s76
      %p87 = scmp.eq.s32.totalorder %s25, 0
      %p88 = por %p86, %p87
      %p89 = scmp.ne.s32.totalorder %s75, %s76
      %p90 = scmp.eq.s32.totalorder %s26, 1
      %p91 = por %p89, %p90
      %p93 = scmp.ne.s32.totalorder %s76, %s92
      %p94 = scmp.eq.s32.totalorder %s26, 0
      %p95 = por %p93, %p94
      %s96 = ssub.s32 %s27, %s39
      %s97 = ssub.s32 %s28, %s35
      %s98 = sor.u32 %s96, %s97
      %p99 = scmp.eq.s32.totalorder %s98, 0
      %s101 = sadd.s32 %s100, 1
      %s102 = scalar_select %p99, %s100, %s101
      %p105 = pneg %p99
      %p106 = scmp.eq.s32.totalorder %s20, 1
      %p107 = por %p105, %p106
      %p108 = scmp.ne.s32.totalorder %s100, %s103
      %p109 = scmp.eq.s32.totalorder %s20, 0
      %p110 = por %p108, %p109
      %p111 = scmp.ne.s32.totalorder %s100, %s103
      %p112 = scmp.eq.s32.totalorder %s25, 1
      %p113 = por %p111, %p112
      %p114 = scmp.ne.s32.totalorder %s103, %s104
      %p115 = scmp.eq.s32.totalorder %s25, 0
      %p116 = por %p114, %p115
      %p117 = scmp.ne.s32.totalorder %s103, %s104
      %p118 = scmp.eq.s32.totalorder %s26, 1
      %p119 = por %p117, %p118
      %p121 = scmp.ne.s32.totalorder %s104, %s120
      %p122 = scmp.eq.s32.totalorder %s26, 0
      %p123 = por %p121, %p122
      %s124 = ssub.s32 %s27, %s39
      %s125 = ssub.s32 %s28, %s35
      %s126 = sor.u32 %s124, %s125
      %p127 = scmp.eq.s32.totalorder %s126, 0
      %s129 = sadd.s32 %s128, 1
      %s130 = scalar_select %p127, %s128, %s129
      %p133 = pneg %p127
      %p134 = scmp.eq.s32.totalorder %s20, 1
      %p135 = por %p133, %p134
      %p136 = scmp.ne.s32.totalorder %s128, %s131
      %p137 = scmp.eq.s32.totalorder %s20, 0
      %p138 = por %p136, %p137
      %p139 = scmp.ne.s32.totalorder %s128, %s131
      %p140 = scmp.eq.s32.totalorder %s25, 1
      %p141 = por %p139, %p140
      %p142 = scmp.ne.s32.totalorder %s131, %s132
      %p143 = scmp.eq.s32.totalorder %s25, 0
      %p144 = por %p142, %p143
      %p145 = scmp.ne.s32.totalorder %s131, %s132
      %p146 = scmp.eq.s32.totalorder %s26, 1
      %p147 = por %p145, %p146
      %p149 = scmp.ne.s32.totalorder %s132, %s148
      %p150 = scmp.eq.s32.totalorder %s26, 0
      %p151 = por %p149, %p150
      %s152 = ssub.s32 %s27, %s39
      %s153 = ssub.s32 %s28, %s35
      %s154 = sor.u32 %s152, %s153
      %p155 = scmp.eq.s32.totalorder %s154, 0
      %s157 = sadd.s32 %s156, 1
      %s158 = scalar_select %p155, %s156, %s157
      %p161 = pneg %p155
      %p162 = scmp.eq.s32.totalorder %s20, 1
      %p163 = por %p161, %p162
      %p164 = scmp.ne.s32.totalorder %s156, %s159
      %p165 = scmp.eq.s32.totalorder %s20, 0
      %p166 = por %p164, %p165
      %p167 = scmp.ne.s32.totalorder %s156, %s159
      %p168 = scmp.eq.s32.totalorder %s25, 1
      %p169 = por %p167, %p168
      %p170 = scmp.ne.s32.totalorder %s159, %s160
      %p171 = scmp.eq.s32.totalorder %s25, 0
      %p172 = por %p170, %p171
      %p173 = scmp.ne.s32.totalorder %s159, %s160
      %p174 = scmp.eq.s32.totalorder %s26, 1
      %p175 = por %p173, %p174
      %p177 = scmp.ne.s32.totalorder %s160, %s176
      %p178 = scmp.eq.s32.totalorder %s26, 0
      %p179 = por %p177, %p178
      %s180 = ssub.s32 %s27, %s39
      %s181 = ssub.s32 %s28, %s35
      %s182 = sor.u32 %s180, %s181
      %p183 = scmp.eq.s32.totalorder %s182, 0
      %s185 = sadd.s32 %s184, 1
      %s186 = scalar_select %p183, %s184, %s185
      %p189 = pneg %p183
      %p190 = scmp.eq.s32.totalorder %s20, 1
      %p191 = por %p189, %p190
      %p192 = scmp.ne.s32.totalorder %s184, %s187
      %p193 = scmp.eq.s32.totalorder %s20, 0
      %p194 = por %p192, %p193
      %p195 = scmp.ne.s32.totalorder %s184, %s187
      %p196 = scmp.eq.s32.totalorder %s25, 1
      %p197 = por %p195, %p196
      %p198 = scmp.ne.s32.totalorder %s187, %s188
      %p199 = scmp.eq.s32.totalorder %s25, 0
      %p200 = por %p198, %p199
      %p201 = scmp.ne.s32.totalorder %s187, %s188
      %p202 = scmp.eq.s32.totalorder %s26, 1
      %p203 = por %p201, %p202
      %p205 = scmp.ne.s32.totalorder %s188, %s204
      %p206 = scmp.eq.s32.totalorder %s26, 0
      %p207 = por %p205, %p206
      %p208 = scmp.le.s32.totalorder 1, %s20
      %p209 = scmp.lt.s32.totalorder %s20, 3
      %p210 = pnand %p208, %p209
      %p211 = pneg %p210
      // Predicated region
      $region9: #{detector_loss.1} parent=5 // pred_check
        _
      $region10: #{detector_loss.1} parent=5 // pred_check_branch
        %213 = sbr.rel (%p210) target = $region12
      $region11: #{detector_loss.1} parent=5 // pred_region
        %s214 = ssub.s32 %s20, 1
      $region12: #{detector_loss.1} parent=5 // pred_fallthru
        _
      %p215 = scmp.lt.s32.totalorder %s20, 2
      // Predicated region
      $region13: #{detector_loss.1} parent=5 // pred_check
        %p216 = pneg %p215
      $region14: #{detector_loss.1} parent=5 // pred_check_branch
        %218 = sbr.rel (%p216) target = $region16
      $region15: #{detector_loss.1} parent=5 // pred_region
        // Predicated region
        $region17: #{detector_loss.1} parent=15 // pred_check
          %p219 = pneg %p54
        $region18: #{detector_loss.1} parent=15 // pred_check_branch
          %221 = sbr.rel (%p219) target = $region20
        $region19: #{detector_loss.1} parent=15 // pred_region
          %s222 = sand.u32 %s44, 1
          %s223 = scalar_lea.sflag [#allocation3], %s222
          %s224 = sand.u32 %s44, 1
          %s225 = smul.addr %s224, 128
          %s226 = scalar_lea.vmem [#allocation2], %s225
          %s227 = smul.u32 16, %s28
          %s229 = ssub.s32 2048, 2048
          %230 = vsyncadd %s223, %s229
          %s231 = smul.addr %s27, 16
          %s232 = sadd.s32 %s227, %s231
          %s233 = smul.addr %s232, 128
          %s234 = scalar_lea.hbm %s0, %s233
          %s235 = sshll.u32 %s226, 4
          %s236 = int_to_ptr.vmem [resolvable:$true] %s235
          %241 = dma.hbm_to_vmem [thread:$0]  %s234, 2048, %s236, %s223, 128, 128, 8
        $region20: #{detector_loss.1} parent=15 // pred_fallthru
          _
        // Predicated region
        $region21: #{detector_loss.1} parent=15 // pred_check
          %p242 = pneg %p82
        $region22: #{detector_loss.1} parent=15 // pred_check_branch
          %244 = sbr.rel (%p242) target = $region24
        $region23: #{detector_loss.1} parent=15 // pred_region
          %s245 = sand.u32 %s20, 1
          %s246 = scalar_lea.sflag [#allocation5], %s245
          %s247 = sand.u32 %s72, 1
          %s248 = smul.addr %s247, 128
          %s249 = scalar_lea.vmem [#allocation4], %s248
          %s250 = smul.u32 16, %s28
          %s252 = ssub.s32 2048, 2048
          %253 = vsyncadd %s246, %s252
          %s254 = smul.addr %s27, 16
          %s255 = sadd.s32 %s250, %s254
          %s256 = smul.addr %s255, 128
          %s257 = scalar_lea.hbm %s1, %s256
          %s258 = sshll.u32 %s249, 4
          %s259 = int_to_ptr.vmem [resolvable:$true] %s258
          %264 = dma.hbm_to_vmem [thread:$0]  %s257, 2048, %s259, %s246, 128, 128, 8
        $region24: #{detector_loss.1} parent=15 // pred_fallthru
          _
        // Predicated region
        $region25: #{detector_loss.1} parent=15 // pred_check
          %p265 = pneg %p110
        $region26: #{detector_loss.1} parent=15 // pred_check_branch
          %267 = sbr.rel (%p265) target = $region28
        $region27: #{detector_loss.1} parent=15 // pred_region
          %s268 = sand.u32 %s20, 1
          %s269 = scalar_lea.sflag [#allocation5], %s268
          %s270 = sand.u32 %s100, 1
          %s271 = smul.addr %s270, 128
          %s272 = scalar_lea.vmem [#allocation6], %s271
          %s273 = smul.u32 16, %s28
          %s275 = ssub.s32 2048, 2048
          %276 = vsyncadd %s269, %s275
          %s277 = smul.addr %s27, 16
          %s278 = sadd.s32 %s273, %s277
          %s279 = smul.addr %s278, 128
          %s280 = scalar_lea.hbm %s2, %s279
          %s281 = sshll.u32 %s272, 4
          %s282 = int_to_ptr.vmem [resolvable:$true] %s281
          %287 = dma.hbm_to_vmem [thread:$0]  %s280, 2048, %s282, %s269, 128, 128, 8
        $region28: #{detector_loss.1} parent=15 // pred_fallthru
          _
        // Predicated region
        $region29: #{detector_loss.1} parent=15 // pred_check
          %p288 = pneg %p138
        $region30: #{detector_loss.1} parent=15 // pred_check_branch
          %290 = sbr.rel (%p288) target = $region32
        $region31: #{detector_loss.1} parent=15 // pred_region
          %s291 = sand.u32 %s20, 1
          %s292 = scalar_lea.sflag [#allocation8], %s291
          %s293 = sand.u32 %s128, 1
          %s294 = smul.addr %s293, 512
          %s295 = scalar_lea.vmem [#allocation7], %s294
          %s296 = smul.u32 16, %s28
          %s298 = ssub.s32 8192, 8192
          %299 = vsyncadd %s292, %s298
          %s300 = smul.addr %s27, 64
          %s301 = sadd.s32 %s296, %s300
          %s302 = smul.addr %s301, 128
          %s303 = scalar_lea.hbm %s3, %s302
          %s304 = sshll.u32 %s295, 4
          %s305 = int_to_ptr.vmem [resolvable:$true] %s304
          %310 = dma.hbm_to_vmem [thread:$0]  %s303, 8192, %s305, %s292, 128, 128, 8
        $region32: #{detector_loss.1} parent=15 // pred_fallthru
          _
        // Predicated region
        $region33: #{detector_loss.1} parent=15 // pred_check
          %p311 = pneg %p166
        $region34: #{detector_loss.1} parent=15 // pred_check_branch
          %313 = sbr.rel (%p311) target = $region36
        $region35: #{detector_loss.1} parent=15 // pred_region
          %s314 = sand.u32 %s20, 1
          %s315 = scalar_lea.sflag [#allocation8], %s314
          %s316 = sand.u32 %s156, 1
          %s317 = smul.addr %s316, 512
          %s318 = scalar_lea.vmem [#allocation9], %s317
          %s319 = smul.u32 16, %s28
          %s321 = ssub.s32 8192, 8192
          %322 = vsyncadd %s315, %s321
          %s323 = smul.addr %s27, 64
          %s324 = sadd.s32 %s319, %s323
          %s325 = smul.addr %s324, 128
          %s326 = scalar_lea.hbm %s4, %s325
          %s327 = sshll.u32 %s318, 4
          %s328 = int_to_ptr.vmem [resolvable:$true] %s327
          %333 = dma.hbm_to_vmem [thread:$0]  %s326, 8192, %s328, %s315, 128, 128, 8
        $region36: #{detector_loss.1} parent=15 // pred_fallthru
          _
      $region16: #{detector_loss.1} parent=5 // pred_fallthru
        _
      %p334 = scmp.le.s32.totalorder 1, %s20
      %p335 = scmp.lt.s32.totalorder %s20, 3
      %p336 = pnand %p334, %p335
      %p337 = pneg %p336
      // Predicated region
      $region37: #{detector_loss.1} parent=5 // pred_check
        _
      $region38: #{detector_loss.1} parent=5 // pred_check_branch
        %339 = sbr.rel (%p336) target = $region40
      $region39: #{detector_loss.1} parent=5 // pred_region
        %s340 = ssub.s32 %s20, 1
        %s341 = sand.u32 %s47, 1
        %s342 = scalar_lea.sflag [#allocation3], %s341
        %s343 = sand.u32 %s47, 1
        %s344 = smul.addr %s343, 128
        %s345 = scalar_lea.vmem [#allocation2], %s344
        // Predicated region
        $region41: #{detector_loss.1} parent=39 // pred_check
          %p346 = pneg %p60
        $region42: #{detector_loss.1} parent=39 // pred_check_branch
          %348 = sbr.rel (%p346) target = $region44
        $region43: #{detector_loss.1} parent=39 // pred_region
          %349 = dma.done %s342, 2048
        $region44: #{detector_loss.1} parent=39 // pred_fallthru
          _
        %s350 = sand.u32 %s25, 1
        %s351 = scalar_lea.sflag [#allocation5], %s350
        %s352 = sand.u32 %s75, 1
        %s353 = smul.addr %s352, 128
        %s354 = scalar_lea.vmem [#allocation4], %s353
        // Predicated region
        $region45: #{detector_loss.1} parent=39 // pred_check
          %p355 = pneg %p88
        $region46: #{detector_loss.1} parent=39 // pred_check_branch
          %357 = sbr.rel (%p355) target = $region48
        $region47: #{detector_loss.1} parent=39 // pred_region
          %358 = dma.done %s351, 2048
        $region48: #{detector_loss.1} parent=39 // pred_fallthru
          _
        %s359 = sand.u32 %s25, 1
        %s360 = scalar_lea.sflag [#allocation5], %s359
        %s361 = sand.u32 %s103, 1
        %s362 = smul.addr %s361, 128
        %s363 = scalar_lea.vmem [#allocation6], %s362
        // Predicated region
        $region49: #{detector_loss.1} parent=39 // pred_check
          %p364 = pneg %p116
        $region50: #{detector_loss.1} parent=39 // pred_check_branch
          %366 = sbr.rel (%p364) target = $region52
        $region51: #{detector_loss.1} parent=39 // pred_region
          %367 = dma.done %s360, 2048
        $region52: #{detector_loss.1} parent=39 // pred_fallthru
          _
        %s368 = sand.u32 %s25, 1
        %s369 = scalar_lea.sflag [#allocation8], %s368
        %s370 = sand.u32 %s131, 1
        %s371 = smul.addr %s370, 512
        %s372 = scalar_lea.vmem [#allocation7], %s371
        // Predicated region
        $region53: #{detector_loss.1} parent=39 // pred_check
          %p373 = pneg %p144
        $region54: #{detector_loss.1} parent=39 // pred_check_branch
          %375 = sbr.rel (%p373) target = $region56
        $region55: #{detector_loss.1} parent=39 // pred_region
          %376 = dma.done %s369, 8192
        $region56: #{detector_loss.1} parent=39 // pred_fallthru
          _
        %s377 = sand.u32 %s25, 1
        %s378 = scalar_lea.sflag [#allocation8], %s377
        %s379 = sand.u32 %s159, 1
        %s380 = smul.addr %s379, 512
        %s381 = scalar_lea.vmem [#allocation9], %s380
        // Predicated region
        $region57: #{detector_loss.1} parent=39 // pred_check
          %p382 = pneg %p172
        $region58: #{detector_loss.1} parent=39 // pred_check_branch
          %384 = sbr.rel (%p382) target = $region60
        $region59: #{detector_loss.1} parent=39 // pred_region
          %385 = dma.done %s378, 8192
        $region60: #{detector_loss.1} parent=39 // pred_fallthru
          _
        %s386 = sand.u32 %s47, 1
        %s387 = scalar_lea.sflag [#allocation3], %s386
        %s388 = sand.u32 %s47, 1
        %s389 = smul.addr %s388, 128
        %s390 = scalar_lea.vmem [#allocation2], %s389
        %p391 = pneg %p60
        %p392 = pneg %p57
        %s393 = sand.u32 %s25, 1
        %s394 = scalar_lea.sflag [#allocation5], %s393
        %s395 = sand.u32 %s75, 1
        %s396 = smul.addr %s395, 128
        %s397 = scalar_lea.vmem [#allocation4], %s396
        %p398 = pneg %p88
        %p399 = pneg %p85
        %s400 = sand.u32 %s25, 1
        %s401 = scalar_lea.sflag [#allocation5], %s400
        %s402 = sand.u32 %s103, 1
        %s403 = smul.addr %s402, 128
        %s404 = scalar_lea.vmem [#allocation6], %s403
        %p405 = pneg %p116
        %p406 = pneg %p113
        %s407 = sand.u32 %s25, 1
        %s408 = scalar_lea.sflag [#allocation8], %s407
        %s409 = sand.u32 %s131, 1
        %s410 = smul.addr %s409, 512
        %s411 = scalar_lea.vmem [#allocation7], %s410
        %p412 = pneg %p144
        %p413 = pneg %p141
        %s414 = sand.u32 %s25, 1
        %s415 = scalar_lea.sflag [#allocation8], %s414
        %s416 = sand.u32 %s159, 1
        %s417 = smul.addr %s416, 512
        %s418 = scalar_lea.vmem [#allocation9], %s417
        %p419 = pneg %p172
        %p420 = pneg %p169
        %p421 = pneg %p200
        %p422 = pneg %p197
        %p423 = scmp.lt.s32.totalorder %s29, 1
        %s424 = scalar_select %p423, %s29, 1
        %p425 = scmp.lt.s32.totalorder %s30, 0
        %s426 = scalar_select %p425, %s30, 0
        %s427 = smul.addr %s426, 4
        %s428 = smul.addr %s424, 4
        %s429 = sadd.s32 %s427, %s428
        %s430 = smul.addr %s429, 8
        %s431 = scalar_lea.vmem %s5, %s430
        %s432 = smul.u32 16, %s30
        %s433 = smul.u32 16, %s30
        %s434 = smul.u32 16, %s30
        %s435 = smul.u32 16, %s30
        %s436 = smul.u32 16, %s30
        %p437 = scmp.lt.s32.totalorder %s29, 1
        %s438 = scalar_select %p437, %s29, 1
        %p439 = scmp.lt.s32.totalorder %s30, 0
        %s440 = scalar_select %p439, %s30, 0
        %s441 = smul.addr %s440, 4
        %s442 = smul.addr %s438, 4
        %s443 = sadd.s32 %s441, %s442
        %s444 = smul.addr %s443, 8
        %s445 = scalar_lea.vmem %s5, %s444
        %v446 = vld [vmem:[%s345] sm:$0xff]
        %v447 = vld [vmem:[%s345 + $0x8] sm:$0xff]
        %v448 = vld [vmem:[%s345 + $0x10] sm:$0xff]
        %v449 = vld [vmem:[%s345 + $0x18] sm:$0xff]
        %v450 = vld [vmem:[%s345 + $0x20] sm:$0xff]
        %v451 = vld [vmem:[%s345 + $0x28] sm:$0xff]
        %v452 = vld [vmem:[%s345 + $0x30] sm:$0xff]
        %v453 = vld [vmem:[%s345 + $0x38] sm:$0xff]
        %v454 = vld [vmem:[%s345 + $0x40] sm:$0xff]
        %v455 = vld [vmem:[%s345 + $0x48] sm:$0xff]
        %v456 = vld [vmem:[%s345 + $0x50] sm:$0xff]
        %v457 = vld [vmem:[%s345 + $0x58] sm:$0xff]
        %v458 = vld [vmem:[%s345 + $0x60] sm:$0xff]
        %v459 = vld [vmem:[%s345 + $0x68] sm:$0xff]
        %v460 = vld [vmem:[%s345 + $0x70] sm:$0xff]
        %v461 = vld [vmem:[%s345 + $0x78] sm:$0xff]
        %v462 = vld [vmem:[%s354] sm:$0xff]
        %v463 = vld [vmem:[%s354 + $0x8] sm:$0xff]
        %v464 = vld [vmem:[%s354 + $0x10] sm:$0xff]
        %v465 = vld [vmem:[%s354 + $0x18] sm:$0xff]
        %v466 = vld [vmem:[%s354 + $0x20] sm:$0xff]
        %v467 = vld [vmem:[%s354 + $0x28] sm:$0xff]
        %v468 = vld [vmem:[%s354 + $0x30] sm:$0xff]
        %v469 = vld [vmem:[%s354 + $0x38] sm:$0xff]
        %v470 = vld [vmem:[%s354 + $0x40] sm:$0xff]
        %v471 = vld [vmem:[%s354 + $0x48] sm:$0xff]
        %v472 = vld [vmem:[%s354 + $0x50] sm:$0xff]
        %v473 = vld [vmem:[%s354 + $0x58] sm:$0xff]
        %v474 = vld [vmem:[%s354 + $0x60] sm:$0xff]
        %v475 = vld [vmem:[%s354 + $0x68] sm:$0xff]
        %v476 = vld [vmem:[%s354 + $0x70] sm:$0xff]
        %v477 = vld [vmem:[%s354 + $0x78] sm:$0xff]
        %v478 = vld [vmem:[%s363] sm:$0xff]
        %v479 = vld [vmem:[%s363 + $0x8] sm:$0xff]
        %v480 = vld [vmem:[%s363 + $0x10] sm:$0xff]
        %v481 = vld [vmem:[%s363 + $0x18] sm:$0xff]
        %v482 = vld [vmem:[%s363 + $0x20] sm:$0xff]
        %v483 = vld [vmem:[%s363 + $0x28] sm:$0xff]
        %v484 = vld [vmem:[%s363 + $0x30] sm:$0xff]
        %v485 = vld [vmem:[%s363 + $0x38] sm:$0xff]
        %v486 = vld [vmem:[%s363 + $0x40] sm:$0xff]
        %v487 = vld [vmem:[%s363 + $0x48] sm:$0xff]
        %v488 = vld [vmem:[%s363 + $0x50] sm:$0xff]
        %v489 = vld [vmem:[%s363 + $0x58] sm:$0xff]
        %v490 = vld [vmem:[%s363 + $0x60] sm:$0xff]
        %v491 = vld [vmem:[%s363 + $0x68] sm:$0xff]
        %v492 = vld [vmem:[%s363 + $0x70] sm:$0xff]
        %v493 = vld [vmem:[%s363 + $0x78] sm:$0xff]
        %v494 = vmul.f32 %v446, %v478
        %v495 = vmul.f32 %v447, %v479
        %v496 = vmul.f32 %v448, %v480
        %v497 = vmul.f32 %v449, %v481
        %v498 = vmul.f32 %v450, %v482
        %v499 = vmul.f32 %v451, %v483
        %v500 = vmul.f32 %v452, %v484
        %v501 = vmul.f32 %v453, %v485
        %v502 = vmul.f32 %v454, %v486
        %v503 = vmul.f32 %v455, %v487
        %v504 = vmul.f32 %v456, %v488
        %v505 = vmul.f32 %v457, %v489
        %v506 = vmul.f32 %v458, %v490
        %v507 = vmul.f32 %v459, %v491
        %v508 = vmul.f32 %v460, %v492
        %v509 = vmul.f32 %v461, %v493
        %v510 = vld [vmem:[%s372] sm:$0xff]
        %v511 = vld [vmem:[%s372 + $0x8] sm:$0xff]
        %v512 = vld [vmem:[%s372 + $0x10] sm:$0xff]
        %v513 = vld [vmem:[%s372 + $0x18] sm:$0xff]
        %v514 = vld [vmem:[%s372 + $0x20] sm:$0xff]
        %v515 = vld [vmem:[%s372 + $0x28] sm:$0xff]
        %v516 = vld [vmem:[%s372 + $0x30] sm:$0xff]
        %v517 = vld [vmem:[%s372 + $0x38] sm:$0xff]
        %v518 = vld [vmem:[%s372 + $0x40] sm:$0xff]
        %v519 = vld [vmem:[%s372 + $0x48] sm:$0xff]
        %v520 = vld [vmem:[%s372 + $0x50] sm:$0xff]
        %v521 = vld [vmem:[%s372 + $0x58] sm:$0xff]
        %v522 = vld [vmem:[%s372 + $0x60] sm:$0xff]
        %v523 = vld [vmem:[%s372 + $0x68] sm:$0xff]
        %v524 = vld [vmem:[%s372 + $0x70] sm:$0xff]
        %v525 = vld [vmem:[%s372 + $0x78] sm:$0xff]
        %s526 = scalar_lea.vmem %s372, 128 [#allocation7]
        %v527 = vld [vmem:[%s526] sm:$0xff]
        %v528 = vld [vmem:[%s526 + $0x8] sm:$0xff]
        %v529 = vld [vmem:[%s526 + $0x10] sm:$0xff]
        %v530 = vld [vmem:[%s526 + $0x18] sm:$0xff]
        %v531 = vld [vmem:[%s526 + $0x20] sm:$0xff]
        %v532 = vld [vmem:[%s526 + $0x28] sm:$0xff]
        %v533 = vld [vmem:[%s526 + $0x30] sm:$0xff]
        %v534 = vld [vmem:[%s526 + $0x38] sm:$0xff]
        %v535 = vld [vmem:[%s526 + $0x40] sm:$0xff]
        %v536 = vld [vmem:[%s526 + $0x48] sm:$0xff]
        %v537 = vld [vmem:[%s526 + $0x50] sm:$0xff]
        %v538 = vld [vmem:[%s526 + $0x58] sm:$0xff]
        %v539 = vld [vmem:[%s526 + $0x60] sm:$0xff]
        %v540 = vld [vmem:[%s526 + $0x68] sm:$0xff]
        %v541 = vld [vmem:[%s526 + $0x70] sm:$0xff]
        %v542 = vld [vmem:[%s526 + $0x78] sm:$0xff]
        %s543 = scalar_lea.vmem %s372, 256 [#allocation7]
        %v544 = vld [vmem:[%s543] sm:$0xff]
        %v545 = vld [vmem:[%s543 + $0x8] sm:$0xff]
        %v546 = vld [vmem:[%s543 + $0x10] sm:$0xff]
        %v547 = vld [vmem:[%s543 + $0x18] sm:$0xff]
        %v548 = vld [vmem:[%s543 + $0x20] sm:$0xff]
        %v549 = vld [vmem:[%s543 + $0x28] sm:$0xff]
        %v550 = vld [vmem:[%s543 + $0x30] sm:$0xff]
        %v551 = vld [vmem:[%s543 + $0x38] sm:$0xff]
        %v552 = vld [vmem:[%s543 + $0x40] sm:$0xff]
        %v553 = vld [vmem:[%s543 + $0x48] sm:$0xff]
        %v554 = vld [vmem:[%s543 + $0x50] sm:$0xff]
        %v555 = vld [vmem:[%s543 + $0x58] sm:$0xff]
        %v556 = vld [vmem:[%s543 + $0x60] sm:$0xff]
        %v557 = vld [vmem:[%s543 + $0x68] sm:$0xff]
        %v558 = vld [vmem:[%s543 + $0x70] sm:$0xff]
        %v559 = vld [vmem:[%s543 + $0x78] sm:$0xff]
        %s560 = scalar_lea.vmem %s372, 384 [#allocation7]
        %v561 = vld [vmem:[%s560] sm:$0xff]
        %v562 = vld [vmem:[%s560 + $0x8] sm:$0xff]
        %v563 = vld [vmem:[%s560 + $0x10] sm:$0xff]
        %v564 = vld [vmem:[%s560 + $0x18] sm:$0xff]
        %v565 = vld [vmem:[%s560 + $0x20] sm:$0xff]
        %v566 = vld [vmem:[%s560 + $0x28] sm:$0xff]
        %v567 = vld [vmem:[%s560 + $0x30] sm:$0xff]
        %v568 = vld [vmem:[%s560 + $0x38] sm:$0xff]
        %v569 = vld [vmem:[%s560 + $0x40] sm:$0xff]
        %v570 = vld [vmem:[%s560 + $0x48] sm:$0xff]
        %v571 = vld [vmem:[%s560 + $0x50] sm:$0xff]
        %v572 = vld [vmem:[%s560 + $0x58] sm:$0xff]
        %v573 = vld [vmem:[%s560 + $0x60] sm:$0xff]
        %v574 = vld [vmem:[%s560 + $0x68] sm:$0xff]
        %v575 = vld [vmem:[%s560 + $0x70] sm:$0xff]
        %v576 = vld [vmem:[%s560 + $0x78] sm:$0xff]
        %v577 = vld [vmem:[%s381] sm:$0xff]
        %v578 = vld [vmem:[%s381 + $0x8] sm:$0xff]
        %v579 = vld [vmem:[%s381 + $0x10] sm:$0xff]
        %v580 = vld [vmem:[%s381 + $0x18] sm:$0xff]
        %v581 = vld [vmem:[%s381 + $0x20] sm:$0xff]
        %v582 = vld [vmem:[%s381 + $0x28] sm:$0xff]
        %v583 = vld [vmem:[%s381 + $0x30] sm:$0xff]
        %v584 = vld [vmem:[%s381 + $0x38] sm:$0xff]
        %v585 = vld [vmem:[%s381 + $0x40] sm:$0xff]
        %v586 = vld [vmem:[%s381 + $0x48] sm:$0xff]
        %v587 = vld [vmem:[%s381 + $0x50] sm:$0xff]
        %v588 = vld [vmem:[%s381 + $0x58] sm:$0xff]
        %v589 = vld [vmem:[%s381 + $0x60] sm:$0xff]
        %v590 = vld [vmem:[%s381 + $0x68] sm:$0xff]
        %v591 = vld [vmem:[%s381 + $0x70] sm:$0xff]
        %v592 = vld [vmem:[%s381 + $0x78] sm:$0xff]
        %s593 = scalar_lea.vmem %s381, 128 [#allocation9]
        %v594 = vld [vmem:[%s593] sm:$0xff]
        %v595 = vld [vmem:[%s593 + $0x8] sm:$0xff]
        %v596 = vld [vmem:[%s593 + $0x10] sm:$0xff]
        %v597 = vld [vmem:[%s593 + $0x18] sm:$0xff]
        %v598 = vld [vmem:[%s593 + $0x20] sm:$0xff]
        %v599 = vld [vmem:[%s593 + $0x28] sm:$0xff]
        %v600 = vld [vmem:[%s593 + $0x30] sm:$0xff]
        %v601 = vld [vmem:[%s593 + $0x38] sm:$0xff]
        %v602 = vld [vmem:[%s593 + $0x40] sm:$0xff]
        %v603 = vld [vmem:[%s593 + $0x48] sm:$0xff]
        %v604 = vld [vmem:[%s593 + $0x50] sm:$0xff]
        %v605 = vld [vmem:[%s593 + $0x58] sm:$0xff]
        %v606 = vld [vmem:[%s593 + $0x60] sm:$0xff]
        %v607 = vld [vmem:[%s593 + $0x68] sm:$0xff]
        %v608 = vld [vmem:[%s593 + $0x70] sm:$0xff]
        %v609 = vld [vmem:[%s593 + $0x78] sm:$0xff]
        %s610 = scalar_lea.vmem %s381, 256 [#allocation9]
        %v611 = vld [vmem:[%s610] sm:$0xff]
        %v612 = vld [vmem:[%s610 + $0x8] sm:$0xff]
        %v613 = vld [vmem:[%s610 + $0x10] sm:$0xff]
        %v614 = vld [vmem:[%s610 + $0x18] sm:$0xff]
        %v615 = vld [vmem:[%s610 + $0x20] sm:$0xff]
        %v616 = vld [vmem:[%s610 + $0x28] sm:$0xff]
        %v617 = vld [vmem:[%s610 + $0x30] sm:$0xff]
        %v618 = vld [vmem:[%s610 + $0x38] sm:$0xff]
        %v619 = vld [vmem:[%s610 + $0x40] sm:$0xff]
        %v620 = vld [vmem:[%s610 + $0x48] sm:$0xff]
        %v621 = vld [vmem:[%s610 + $0x50] sm:$0xff]
        %v622 = vld [vmem:[%s610 + $0x58] sm:$0xff]
        %v623 = vld [vmem:[%s610 + $0x60] sm:$0xff]
        %v624 = vld [vmem:[%s610 + $0x68] sm:$0xff]
        %v625 = vld [vmem:[%s610 + $0x70] sm:$0xff]
        %v626 = vld [vmem:[%s610 + $0x78] sm:$0xff]
        %s627 = scalar_lea.vmem %s381, 384 [#allocation9]
        %v628 = vld [vmem:[%s627] sm:$0xff]
        %v629 = vld [vmem:[%s627 + $0x8] sm:$0xff]
        %v630 = vld [vmem:[%s627 + $0x10] sm:$0xff]
        %v631 = vld [vmem:[%s627 + $0x18] sm:$0xff]
        %v632 = vld [vmem:[%s627 + $0x20] sm:$0xff]
        %v633 = vld [vmem:[%s627 + $0x28] sm:$0xff]
        %v634 = vld [vmem:[%s627 + $0x30] sm:$0xff]
        %v635 = vld [vmem:[%s627 + $0x38] sm:$0xff]
        %v636 = vld [vmem:[%s627 + $0x40] sm:$0xff]
        %v637 = vld [vmem:[%s627 + $0x48] sm:$0xff]
        %v638 = vld [vmem:[%s627 + $0x50] sm:$0xff]
        %v639 = vld [vmem:[%s627 + $0x58] sm:$0xff]
        %v640 = vld [vmem:[%s627 + $0x60] sm:$0xff]
        %v641 = vld [vmem:[%s627 + $0x68] sm:$0xff]
        %v642 = vld [vmem:[%s627 + $0x70] sm:$0xff]
        %v643 = vld [vmem:[%s627 + $0x78] sm:$0xff]
        %v644 = vadd.f32 %v510, %v544
        %v645 = vadd.f32 %v511, %v545
        %v646 = vadd.f32 %v512, %v546
        %v647 = vadd.f32 %v513, %v547
        %v648 = vadd.f32 %v514, %v548
        %v649 = vadd.f32 %v515, %v549
        %v650 = vadd.f32 %v516, %v550
        %v651 = vadd.f32 %v517, %v551
        %v652 = vadd.f32 %v518, %v552
        %v653 = vadd.f32 %v519, %v553
        %v654 = vadd.f32 %v520, %v554
        %v655 = vadd.f32 %v521, %v555
        %v656 = vadd.f32 %v522, %v556
        %v657 = vadd.f32 %v523, %v557
        %v658 = vadd.f32 %v524, %v558
        %v659 = vadd.f32 %v525, %v559
        %v660 = vadd.f32 %v527, %v561
        %v661 = vadd.f32 %v528, %v562
        %v662 = vadd.f32 %v529, %v563
        %v663 = vadd.f32 %v530, %v564
        %v664 = vadd.f32 %v531, %v565
        %v665 = vadd.f32 %v532, %v566
        %v666 = vadd.f32 %v533, %v567
        %v667 = vadd.f32 %v534, %v568
        %v668 = vadd.f32 %v535, %v569
        %v669 = vadd.f32 %v536, %v570
        %v670 = vadd.f32 %v537, %v571
        %v671 = vadd.f32 %v538, %v572
        %v672 = vadd.f32 %v539, %v573
        %v673 = vadd.f32 %v540, %v574
        %v674 = vadd.f32 %v541, %v575
        %v675 = vadd.f32 %v542, %v576
        %v676 = vmul.f32 %v644, %v660
        %v677 = vmul.f32 %v645, %v661
        %v678 = vmul.f32 %v646, %v662
        %v679 = vmul.f32 %v647, %v663
        %v680 = vmul.f32 %v648, %v664
        %v681 = vmul.f32 %v649, %v665
        %v682 = vmul.f32 %v650, %v666
        %v683 = vmul.f32 %v651, %v667
        %v684 = vmul.f32 %v652, %v668
        %v685 = vmul.f32 %v653, %v669
        %v686 = vmul.f32 %v654, %v670
        %v687 = vmul.f32 %v655, %v671
        %v688 = vmul.f32 %v656, %v672
        %v689 = vmul.f32 %v657, %v673
        %v690 = vmul.f32 %v658, %v674
        %v691 = vmul.f32 %v659, %v675
        %v692 = vadd.f32 %v577, %v611
        %v693 = vadd.f32 %v578, %v612
        %v694 = vadd.f32 %v579, %v613
        %v695 = vadd.f32 %v580, %v614
        %v696 = vadd.f32 %v581, %v615
        %v697 = vadd.f32 %v582, %v616
        %v698 = vadd.f32 %v583, %v617
        %v699 = vadd.f32 %v584, %v618
        %v700 = vadd.f32 %v585, %v619
        %v701 = vadd.f32 %v586, %v620
        %v702 = vadd.f32 %v587, %v621
        %v703 = vadd.f32 %v588, %v622
        %v704 = vadd.f32 %v589, %v623
        %v705 = vadd.f32 %v590, %v624
        %v706 = vadd.f32 %v591, %v625
        %v707 = vadd.f32 %v592, %v626
        %v708 = vadd.f32 %v594, %v628
        %v709 = vadd.f32 %v595, %v629
        %v710 = vadd.f32 %v596, %v630
        %v711 = vadd.f32 %v597, %v631
        %v712 = vadd.f32 %v598, %v632
        %v713 = vadd.f32 %v599, %v633
        %v714 = vadd.f32 %v600, %v634
        %v715 = vadd.f32 %v601, %v635
        %v716 = vadd.f32 %v602, %v636
        %v717 = vadd.f32 %v603, %v637
        %v718 = vadd.f32 %v604, %v638
        %v719 = vadd.f32 %v605, %v639
        %v720 = vadd.f32 %v606, %v640
        %v721 = vadd.f32 %v607, %v641
        %v722 = vadd.f32 %v608, %v642
        %v723 = vadd.f32 %v609, %v643
        %v724 = vmul.f32 %v692, %v708
        %v725 = vmul.f32 %v693, %v709
        %v726 = vmul.f32 %v694, %v710
        %v727 = vmul.f32 %v695, %v711
        %v728 = vmul.f32 %v696, %v712
        %v729 = vmul.f32 %v697, %v713
        %v730 = vmul.f32 %v698, %v714
        %v731 = vmul.f32 %v699, %v715
        %v732 = vmul.f32 %v700, %v716
        %v733 = vmul.f32 %v701, %v717
        %v734 = vmul.f32 %v702, %v718
        %v735 = vmul.f32 %v703, %v719
        %v736 = vmul.f32 %v704, %v720
        %v737 = vmul.f32 %v705, %v721
        %v738 = vmul.f32 %v706, %v722
        %v739 = vmul.f32 %v707, %v723
        %v740 = vmin.f32 %v527, %v594
        %v741 = vmin.f32 %v528, %v595
        %v742 = vmin.f32 %v529, %v596
        %v743 = vmin.f32 %v530, %v597
        %v744 = vmin.f32 %v531, %v598
        %v745 = vmin.f32 %v532, %v599
        %v746 = vmin.f32 %v533, %v600
        %v747 = vmin.f32 %v534, %v601
        %v748 = vmin.f32 %v535, %v602
        %v749 = vmin.f32 %v536, %v603
        %v750 = vmin.f32 %v537, %v604
        %v751 = vmin.f32 %v538, %v605
        %v752 = vmin.f32 %v539, %v606
        %v753 = vmin.f32 %v540, %v607
        %v754 = vmin.f32 %v541, %v608
        %v755 = vmin.f32 %v542, %v609
        %v756 = vmin.f32 %v561, %v628
        %v757 = vmin.f32 %v562, %v629
        %v758 = vmin.f32 %v563, %v630
        %v759 = vmin.f32 %v564, %v631
        %v760 = vmin.f32 %v565, %v632
        %v761 = vmin.f32 %v566, %v633
        %v762 = vmin.f32 %v567, %v634
        %v763 = vmin.f32 %v568, %v635
        %v764 = vmin.f32 %v569, %v636
        %v765 = vmin.f32 %v570, %v637
        %v766 = vmin.f32 %v571, %v638
        %v767 = vmin.f32 %v572, %v639
        %v768 = vmin.f32 %v573, %v640
        %v769 = vmin.f32 %v574, %v641
        %v770 = vmin.f32 %v575, %v642
        %v771 = vmin.f32 %v576, %v643
        %v772 = vadd.f32 %v740, %v756
        %v773 = vadd.f32 %v741, %v757
        %v774 = vadd.f32 %v742, %v758
        %v775 = vadd.f32 %v743, %v759
        %v776 = vadd.f32 %v744, %v760
        %v777 = vadd.f32 %v745, %v761
        %v778 = vadd.f32 %v746, %v762
        %v779 = vadd.f32 %v747, %v763
        %v780 = vadd.f32 %v748, %v764
        %v781 = vadd.f32 %v749, %v765
        %v782 = vadd.f32 %v750, %v766
        %v783 = vadd.f32 %v751, %v767
        %v784 = vadd.f32 %v752, %v768
        %v785 = vadd.f32 %v753, %v769
        %v786 = vadd.f32 %v754, %v770
        %v787 = vadd.f32 %v755, %v771
        %v788 = vmin.f32 %v510, %v577
        %v789 = vmin.f32 %v511, %v578
        %v790 = vmin.f32 %v512, %v579
        %v791 = vmin.f32 %v513, %v580
        %v792 = vmin.f32 %v514, %v581
        %v793 = vmin.f32 %v515, %v582
        %v794 = vmin.f32 %v516, %v583
        %v795 = vmin.f32 %v517, %v584
        %v796 = vmin.f32 %v518, %v585
        %v797 = vmin.f32 %v519, %v586
        %v798 = vmin.f32 %v520, %v587
        %v799 = vmin.f32 %v521, %v588
        %v800 = vmin.f32 %v522, %v589
        %v801 = vmin.f32 %v523, %v590
        %v802 = vmin.f32 %v524, %v591
        %v803 = vmin.f32 %v525, %v592
        %v804 = vmin.f32 %v544, %v611
        %v805 = vmin.f32 %v545, %v612
        %v806 = vmin.f32 %v546, %v613
        %v807 = vmin.f32 %v547, %v614
        %v808 = vmin.f32 %v548, %v615
        %v809 = vmin.f32 %v549, %v616
        %v810 = vmin.f32 %v550, %v617
        %v811 = vmin.f32 %v551, %v618
        %v812 = vmin.f32 %v552, %v619
        %v813 = vmin.f32 %v553, %v620
        %v814 = vmin.f32 %v554, %v621
        %v815 = vmin.f32 %v555, %v622
        %v816 = vmin.f32 %v556, %v623
        %v817 = vmin.f32 %v557, %v624
        %v818 = vmin.f32 %v558, %v625
        %v819 = vmin.f32 %v559, %v626
        %v820 = vadd.f32 %v788, %v804
        %v821 = vadd.f32 %v789, %v805
        %v822 = vadd.f32 %v790, %v806
        %v823 = vadd.f32 %v791, %v807
        %v824 = vadd.f32 %v792, %v808
        %v825 = vadd.f32 %v793, %v809
        %v826 = vadd.f32 %v794, %v810
        %v827 = vadd.f32 %v795, %v811
        %v828 = vadd.f32 %v796, %v812
        %v829 = vadd.f32 %v797, %v813
        %v830 = vadd.f32 %v798, %v814
        %v831 = vadd.f32 %v799, %v815
        %v832 = vadd.f32 %v800, %v816
        %v833 = vadd.f32 %v801, %v817
        %v834 = vadd.f32 %v802, %v818
        %v835 = vadd.f32 %v803, %v819
        %v836 = vmul.f32 %v772, %v820
        %v837 = vmul.f32 %v773, %v821
        %v838 = vmul.f32 %v774, %v822
        %v839 = vmul.f32 %v775, %v823
        %v840 = vmul.f32 %v776, %v824
        %v841 = vmul.f32 %v777, %v825
        %v842 = vmul.f32 %v778, %v826
        %v843 = vmul.f32 %v779, %v827
        %v844 = vmul.f32 %v780, %v828
        %v845 = vmul.f32 %v781, %v829
        %v846 = vmul.f32 %v782, %v830
        %v847 = vmul.f32 %v783, %v831
        %v848 = vmul.f32 %v784, %v832
        %v849 = vmul.f32 %v785, %v833
        %v850 = vmul.f32 %v786, %v834
        %v851 = vmul.f32 %v787, %v835
        %v852 = vadd.f32 %v676, %v724
        %v853 = vadd.f32 %v677, %v725
        %v854 = vadd.f32 %v678, %v726
        %v855 = vadd.f32 %v679, %v727
        %v856 = vadd.f32 %v680, %v728
        %v857 = vadd.f32 %v681, %v729
        %v858 = vadd.f32 %v682, %v730
        %v859 = vadd.f32 %v683, %v731
        %v860 = vadd.f32 %v684, %v732
        %v861 = vadd.f32 %v685, %v733
        %v862 = vadd.f32 %v686, %v734
        %v863 = vadd.f32 %v687, %v735
        %v864 = vadd.f32 %v688, %v736
        %v865 = vadd.f32 %v689, %v737
        %v866 = vadd.f32 %v690, %v738
        %v867 = vadd.f32 %v691, %v739
        %v868 = vsub.f32 %v852, %v836
        %v869 = vsub.f32 %v853, %v837
        %v870 = vsub.f32 %v854, %v838
        %v871 = vsub.f32 %v855, %v839
        %v872 = vsub.f32 %v856, %v840
        %v873 = vsub.f32 %v857, %v841
        %v874 = vsub.f32 %v858, %v842
        %v875 = vsub.f32 %v859, %v843
        %v876 = vsub.f32 %v860, %v844
        %v877 = vsub.f32 %v861, %v845
        %v878 = vsub.f32 %v862, %v846
        %v879 = vsub.f32 %v863, %v847
        %v880 = vsub.f32 %v864, %v848
        %v881 = vsub.f32 %v865, %v849
        %v882 = vsub.f32 %v866, %v850
        %v883 = vsub.f32 %v867, %v851
        %v884 = vadd.f32 %v868, 1.0
        %v885 = vadd.f32 %v869, 1.0
        %v886 = vadd.f32 %v870, 1.0
        %v887 = vadd.f32 %v871, 1.0
        %v888 = vadd.f32 %v872, 1.0
        %v889 = vadd.f32 %v873, 1.0
        %v890 = vadd.f32 %v874, 1.0
        %v891 = vadd.f32 %v875, 1.0
        %v892 = vadd.f32 %v876, 1.0
        %v893 = vadd.f32 %v877, 1.0
        %v894 = vadd.f32 %v878, 1.0
        %v895 = vadd.f32 %v879, 1.0
        %v896 = vadd.f32 %v880, 1.0
        %v897 = vadd.f32 %v881, 1.0
        %v898 = vadd.f32 %v882, 1.0
        %v899 = vadd.f32 %v883, 1.0
        %v900 = vlog2.pop %v884
        %v901 = vmul.f32 %v900, 0.6931472
        %v902 = vlog2.pop %v885
        %v903 = vmul.f32 %v902, 0.6931472
        %v904 = vlog2.pop %v886
        %v905 = vmul.f32 %v904, 0.6931472
        %v906 = vlog2.pop %v887
        %v907 = vmul.f32 %v906, 0.6931472
        %v908 = vlog2.pop %v888
        %v909 = vmul.f32 %v908, 0.6931472
        %v910 = vlog2.pop %v889
        %v911 = vmul.f32 %v910, 0.6931472
        %v912 = vlog2.pop %v890
        %v913 = vmul.f32 %v912, 0.6931472
        %v914 = vlog2.pop %v891
        %v915 = vmul.f32 %v914, 0.6931472
        %v916 = vlog2.pop %v892
        %v917 = vmul.f32 %v916, 0.6931472
        %v918 = vlog2.pop %v893
        %v919 = vmul.f32 %v918, 0.6931472
        %v920 = vlog2.pop %v894
        %v921 = vmul.f32 %v920, 0.6931472
        %v922 = vlog2.pop %v895
        %v923 = vmul.f32 %v922, 0.6931472
        %v924 = vlog2.pop %v896
        %v925 = vmul.f32 %v924, 0.6931472
        %v926 = vlog2.pop %v897
        %v927 = vmul.f32 %v926, 0.6931472
        %v928 = vlog2.pop %v898
        %v929 = vmul.f32 %v928, 0.6931472
        %v930 = vlog2.pop %v899
        %v931 = vmul.f32 %v930, 0.6931472
        %v932 = vadd.f32 %v836, 1.0
        %v933 = vadd.f32 %v837, 1.0
        %v934 = vadd.f32 %v838, 1.0
        %v935 = vadd.f32 %v839, 1.0
        %v936 = vadd.f32 %v840, 1.0
        %v937 = vadd.f32 %v841, 1.0
        %v938 = vadd.f32 %v842, 1.0
        %v939 = vadd.f32 %v843, 1.0
        %v940 = vadd.f32 %v844, 1.0
        %v941 = vadd.f32 %v845, 1.0
        %v942 = vadd.f32 %v846, 1.0
        %v943 = vadd.f32 %v847, 1.0
        %v944 = vadd.f32 %v848, 1.0
        %v945 = vadd.f32 %v849, 1.0
        %v946 = vadd.f32 %v850, 1.0
        %v947 = vadd.f32 %v851, 1.0
        %v948 = vlog2.pop %v932
        %v949 = vmul.f32 %v948, 0.6931472
        %v950 = vlog2.pop %v933
        %v951 = vmul.f32 %v950, 0.6931472
        %v952 = vlog2.pop %v934
        %v953 = vmul.f32 %v952, 0.6931472
        %v954 = vlog2.pop %v935
        %v955 = vmul.f32 %v954, 0.6931472
        %v956 = vlog2.pop %v936
        %v957 = vmul.f32 %v956, 0.6931472
        %v958 = vlog2.pop %v937
        %v959 = vmul.f32 %v958, 0.6931472
        %v960 = vlog2.pop %v938
        %v961 = vmul.f32 %v960, 0.6931472
        %v962 = vlog2.pop %v939
        %v963 = vmul.f32 %v962, 0.6931472
        %v964 = vlog2.pop %v940
        %v965 = vmul.f32 %v964, 0.6931472
        %v966 = vlog2.pop %v941
        %v967 = vmul.f32 %v966, 0.6931472
        %v968 = vlog2.pop %v942
        %v969 = vmul.f32 %v968, 0.6931472
        %v970 = vlog2.pop %v943
        %v971 = vmul.f32 %v970, 0.6931472
        %v972 = vlog2.pop %v944
        %v973 = vmul.f32 %v972, 0.6931472
        %v974 = vlog2.pop %v945
        %v975 = vmul.f32 %v974, 0.6931472
        %v976 = vlog2.pop %v946
        %v977 = vmul.f32 %v976, 0.6931472
        %v978 = vlog2.pop %v947
        %v979 = vmul.f32 %v978, 0.6931472
        %v980 = vsub.f32 %v901, %v949
        %v981 = vsub.f32 %v903, %v951
        %v982 = vsub.f32 %v905, %v953
        %v983 = vsub.f32 %v907, %v955
        %v984 = vsub.f32 %v909, %v957
        %v985 = vsub.f32 %v911, %v959
        %v986 = vsub.f32 %v913, %v961
        %v987 = vsub.f32 %v915, %v963
        %v988 = vsub.f32 %v917, %v965
        %v989 = vsub.f32 %v919, %v967
        %v990 = vsub.f32 %v921, %v969
        %v991 = vsub.f32 %v923, %v971
        %v992 = vsub.f32 %v925, %v973
        %v993 = vsub.f32 %v927, %v975
        %v994 = vsub.f32 %v929, %v977
        %v995 = vsub.f32 %v931, %v979
        %v996 = vmul.f32 %v494, %v462
        %v997 = vmul.f32 %v495, %v463
        %v998 = vmul.f32 %v496, %v464
        %v999 = vmul.f32 %v497, %v465
        %v1000 = vmul.f32 %v498, %v466
        %v1001 = vmul.f32 %v499, %v467
        %v1002 = vmul.f32 %v500, %v468
        %v1003 = vmul.f32 %v501, %v469
        %v1004 = vmul.f32 %v502, %v470
        %v1005 = vmul.f32 %v503, %v471
        %v1006 = vmul.f32 %v504, %v472
        %v1007 = vmul.f32 %v505, %v473
        %v1008 = vmul.f32 %v506, %v474
        %v1009 = vmul.f32 %v507, %v475
        %v1010 = vmul.f32 %v508, %v476
        %v1011 = vmul.f32 %v509, %v477
        %v1012 = vadd.f32 %v996, %v997
        %v1013 = vadd.f32 %v1012, %v998
        %v1014 = vadd.f32 %v1013, %v999
        %v1015 = vadd.f32 %v1014, %v1000
        %v1016 = vadd.f32 %v1015, %v1001
        %v1017 = vadd.f32 %v1016, %v1002
        %v1018 = vadd.f32 %v1017, %v1003
        %v1019 = vadd.f32 %v1018, %v1004
        %v1020 = vadd.f32 %v1019, %v1005
        %v1021 = vadd.f32 %v1020, %v1006
        %v1022 = vadd.f32 %v1021, %v1007
        %v1023 = vadd.f32 %v1022, %v1008
        %v1024 = vadd.f32 %v1023, %v1009
        %v1025 = vadd.f32 %v1024, %v1010
        %v1026 = vadd.f32 %v1025, %v1011
        %1027 = vst [vmem:[%s445] sm:$0xff] %v1026
        %v1028 = vadd.f32 %v494, %v495
        %v1029 = vadd.f32 %v1028, %v496
        %v1030 = vadd.f32 %v1029, %v497
        %v1031 = vadd.f32 %v1030, %v498
        %v1032 = vadd.f32 %v1031, %v499
        %v1033 = vadd.f32 %v1032, %v500
        %v1034 = vadd.f32 %v1033, %v501
        %v1035 = vadd.f32 %v1034, %v502
        %v1036 = vadd.f32 %v1035, %v503
        %v1037 = vadd.f32 %v1036, %v504
        %v1038 = vadd.f32 %v1037, %v505
        %v1039 = vadd.f32 %v1038, %v506
        %v1040 = vadd.f32 %v1039, %v507
        %v1041 = vadd.f32 %v1040, %v508
        %v1042 = vadd.f32 %v1041, %v509
        %1043 = vst [vmem:[%s445 + $0x8] sm:$0xff] %v1042
        %v1044 = vmul.f32 %v462, %v478
        %v1045 = vmul.f32 %v463, %v479
        %v1046 = vmul.f32 %v464, %v480
        %v1047 = vmul.f32 %v465, %v481
        %v1048 = vmul.f32 %v466, %v482
        %v1049 = vmul.f32 %v467, %v483
        %v1050 = vmul.f32 %v468, %v484
        %v1051 = vmul.f32 %v469, %v485
        %v1052 = vmul.f32 %v470, %v486
        %v1053 = vmul.f32 %v471, %v487
        %v1054 = vmul.f32 %v472, %v488
        %v1055 = vmul.f32 %v473, %v489
        %v1056 = vmul.f32 %v474, %v490
        %v1057 = vmul.f32 %v475, %v491
        %v1058 = vmul.f32 %v476, %v492
        %v1059 = vmul.f32 %v477, %v493
        %v1060 = vadd.f32 %v1044, %v1045
        %v1061 = vadd.f32 %v1060, %v1046
        %v1062 = vadd.f32 %v1061, %v1047
        %v1063 = vadd.f32 %v1062, %v1048
        %v1064 = vadd.f32 %v1063, %v1049
        %v1065 = vadd.f32 %v1064, %v1050
        %v1066 = vadd.f32 %v1065, %v1051
        %v1067 = vadd.f32 %v1066, %v1052
        %v1068 = vadd.f32 %v1067, %v1053
        %v1069 = vadd.f32 %v1068, %v1054
        %v1070 = vadd.f32 %v1069, %v1055
        %v1071 = vadd.f32 %v1070, %v1056
        %v1072 = vadd.f32 %v1071, %v1057
        %v1073 = vadd.f32 %v1072, %v1058
        %v1074 = vadd.f32 %v1073, %v1059
        %1075 = vst [vmem:[%s445 + $0x10] sm:$0xff] %v1074
        %v1076 = vmul.f32 %v980, %v494
        %v1077 = vmul.f32 %v981, %v495
        %v1078 = vmul.f32 %v982, %v496
        %v1079 = vmul.f32 %v983, %v497
        %v1080 = vmul.f32 %v984, %v498
        %v1081 = vmul.f32 %v985, %v499
        %v1082 = vmul.f32 %v986, %v500
        %v1083 = vmul.f32 %v987, %v501
        %v1084 = vmul.f32 %v988, %v502
        %v1085 = vmul.f32 %v989, %v503
        %v1086 = vmul.f32 %v990, %v504
        %v1087 = vmul.f32 %v991, %v505
        %v1088 = vmul.f32 %v992, %v506
        %v1089 = vmul.f32 %v993, %v507
        %v1090 = vmul.f32 %v994, %v508
        %v1091 = vmul.f32 %v995, %v509
        %v1092 = vadd.f32 %v1076, %v1077
        %v1093 = vadd.f32 %v1092, %v1078
        %v1094 = vadd.f32 %v1093, %v1079
        %v1095 = vadd.f32 %v1094, %v1080
        %v1096 = vadd.f32 %v1095, %v1081
        %v1097 = vadd.f32 %v1096, %v1082
        %v1098 = vadd.f32 %v1097, %v1083
        %v1099 = vadd.f32 %v1098, %v1084
        %v1100 = vadd.f32 %v1099, %v1085
        %v1101 = vadd.f32 %v1100, %v1086
        %v1102 = vadd.f32 %v1101, %v1087
        %v1103 = vadd.f32 %v1102, %v1088
        %v1104 = vadd.f32 %v1103, %v1089
        %v1105 = vadd.f32 %v1104, %v1090
        %v1106 = vadd.f32 %v1105, %v1091
        %1107 = vst [vmem:[%s445 + $0x18] sm:$0xff] %v1106
        %p1108 = scmp.lt.s32.totalorder %s29, 1
        %s1109 = scalar_select %p1108, %s29, 1
        %p1110 = scmp.lt.s32.totalorder %s30, 0
        %s1111 = scalar_select %p1110, %s30, 0
        %s1112 = smul.addr %s1111, 4
        %s1113 = smul.addr %s1109, 4
        %s1114 = sadd.s32 %s1112, %s1113
        %s1115 = smul.addr %s1114, 8
        %s1116 = scalar_lea.vmem %s5, %s1115
        // Predicated region
        $region61: #{detector_loss.1} parent=39 // pred_check
          %p1117 = pneg %p197
        $region62: #{detector_loss.1} parent=39 // pred_check_branch
          %1119 = sbr.rel (%p1117) target = $region64
        $region63: #{detector_loss.1} parent=39 // pred_region
          _
        $region64: #{detector_loss.1} parent=39 // pred_fallthru
          _
      $region40: #{detector_loss.1} parent=5 // pred_fallthru
        _
      %p1120 = scmp.le.s32.totalorder 2, %s20
      // Predicated region
      $region65: #{detector_loss.1} parent=5 // pred_check
        %p1121 = pneg %p1120
      $region66: #{detector_loss.1} parent=5 // pred_check_branch
        %1123 = sbr.rel (%p1121) target = $region68
      $region67: #{detector_loss.1} parent=5 // pred_region
        %s1124 = ssub.s32 %s20, 2
        // Predicated region
        $region69: #{detector_loss.1} parent=67 // pred_check
          %p1125 = pneg %p203
        $region70: #{detector_loss.1} parent=67 // pred_check_branch
          %1127 = sbr.rel (%p1125) target = $region72
        $region71: #{detector_loss.1} parent=67 // pred_region
          %p1128 = scmp.lt.s32.totalorder %s31, 1
          %s1129 = scalar_select %p1128, %s31, 1
          %p1130 = scmp.lt.s32.totalorder %s32, 0
          %s1131 = scalar_select %p1130, %s32, 0
          %s1132 = smul.addr %s1131, 4
          %s1133 = smul.addr %s1129, 4
          %s1134 = sadd.s32 %s1132, %s1133
          %s1135 = smul.addr %s1134, 8
          %s1136 = scalar_lea.vmem %s5, %s1135
        $region72: #{detector_loss.1} parent=67 // pred_fallthru
          _
      $region68: #{detector_loss.1} parent=5 // pred_fallthru
        _
    $region6: #{detector_loss.1} parent=1 // loop_footer
      %s24 = sadd.s32 1, %s20
    $region7: #{detector_loss.1} parent=1 // loop_footer_branch
      %19 = sbr.rel target = $region3
    $region8: #{detector_loss.1} parent=1 // loop_exit
      _
    %1137 = vsyncpa [#allocation3], 1
    %s1138 = scalar_lea.sflag [#allocation3], 1
    %1139 = vsyncpa %s1138, 1
    %1140 = vsyncpa [#allocation5], 1
    %s1141 = scalar_lea.sflag [#allocation5], 1
    %1142 = vsyncpa %s1141, 1
    %1143 = vsyncpa [#allocation8], 1
    %s1144 = scalar_lea.sflag [#allocation8], 1
    %1145 = vsyncpa %s1144, 1

</llo_original>
